<compile_context>
chip_gen: v5e
topology: v5e:2x2
jax: 0.10.0
libtpu: 0.0.40
codegen_flags: <defaults>
</compile_context>

<pallas_src>
import functools

import jax
import jax.numpy as jnp
from jax.experimental import pallas as pl
from jax.experimental.pallas import tpu as pltpu

HIDDEN = 16


def _round_up(x, m):
    return ((x + m - 1) // m) * m


def _actor_kernel(x_ref, p_ref, o_ref, *, state_dim, hidden, a_pad,
                  bias_col, apply_tanh, scale, shift):
    # x_ref: (state_dim, TILE_B)  -- batch on the 128-lane axis (lane-dense)
    # p_ref: (R_pad, C_pad)       -- packed params, constant index -> single DMA
    # o_ref: (a_pad, TILE_B)      -- batch on lanes, sublane-padded rows
    x = x_ref[...]

    w1 = p_ref[0:hidden, 0:state_dim]                               # (16, S)
    b1 = p_ref[0:hidden, bias_col:bias_col + 1]                     # (16, 1)
    w2 = p_ref[hidden:2 * hidden, 0:hidden]                         # (16, 16)
    b2 = p_ref[hidden:2 * hidden, bias_col:bias_col + 1]            # (16, 1)
    w3 = p_ref[2 * hidden:2 * hidden + a_pad, 0:hidden]             # (a_pad, 16), pad rows = 0
    b3 = p_ref[2 * hidden:2 * hidden + a_pad, bias_col:bias_col + 1]

    h1 = jnp.maximum(jnp.dot(w1, x, preferred_element_type=jnp.float32) + b1, 0.0)
    h2 = jnp.maximum(jnp.dot(w2, h1, preferred_element_type=jnp.float32) + b2, 0.0)
    z = jnp.dot(w3, h2, preferred_element_type=jnp.float32) + b3     # (a_pad, TILE_B)
    if apply_tanh:
        z = jnp.tanh(z) * scale + shift                              # EUP tanh (free slot)
    o_ref[...] = z.astype(o_ref.dtype)


def init_actor_params(key, state_dim, action_dim):
    """nn.Linear-style U(-1/sqrt(fan_in), 1/sqrt(fan_in)); PyTorch (out, in) layout."""
    dims = [(state_dim, HIDDEN), (HIDDEN, HIDDEN), (HIDDEN, action_dim)]
    params = []
    for fan_in, fan_out in dims:
        kw, kb, key = jax.random.split(key, 3)
        bound = 1.0 / jnp.sqrt(float(fan_in))
        w = jax.random.uniform(kw, (fan_out, fan_in), jnp.float32, -bound, bound)
        b = jax.random.uniform(kb, (fan_out,), jnp.float32, -bound, bound)
        params += [w, b]
    return tuple(params)


def pack_actor_params(params, state_dim, action_dim):
    """Pack (w1,b1,w2,b2,w3,b3) into one lane-aligned fp32 buffer (single DMA).

    Rows: [0:16) = W1, [16:32) = W2, [32:32+round_up(A,8)) = W3 (zero-padded).
    Last column holds the biases.
    """
    w1, b1, w2, b2, w3, b3 = params
    a_pad = _round_up(action_dim, 8)
    r_pad = _round_up(2 * HIDDEN + a_pad, 8)
    c_pad = _round_up(max(state_dim, HIDDEN) + 1, 128)
    bias_col = c_pad - 1
    buf = jnp.zeros((r_pad, c_pad), jnp.float32)
    buf = buf.at[0:HIDDEN, 0:state_dim].set(w1)
    buf = buf.at[0:HIDDEN, bias_col].set(b1)
    buf = buf.at[HIDDEN:2 * HIDDEN, 0:HIDDEN].set(w2)
    buf = buf.at[HIDDEN:2 * HIDDEN, bias_col].set(b2)
    buf = buf.at[2 * HIDDEN:2 * HIDDEN + action_dim, 0:HIDDEN].set(w3)
    buf = buf.at[2 * HIDDEN:2 * HIDDEN + action_dim, bias_col].set(b3)
    return buf


def actor_forward(state, packed_params, action_dim, max_action, min_action,
                  *, tile_b=4096, state_transposed=False, transposed_output=False):
    """state: (B, state_dim) (or (state_dim, B) if state_transposed) -> (B, action_dim)."""
    if state_transposed:
        state_dim, B = state.shape
        state_t = state
    else:
        B, state_dim = state.shape
        state_t = jnp.transpose(state)   # one pass; pass (S, B) directly to skip it

    a_pad = _round_up(action_dim, 8)
    bias_col = packed_params.shape[1] - 1

    # Tile selection: single tile when the batch fits; otherwise >=2 even,
    # 128-lane-aligned tiles so the "parallel" axis spans both TCs on v7x.
    if B <= tile_b:
        tile_b_eff, n_tiles = B, 1
    else:
        n_tiles = pl.cdiv(B, tile_b)
        if n_tiles % 2:
            n_tiles += 1
        tile_b_eff = _round_up(pl.cdiv(B, n_tiles), 128)
        n_tiles = pl.cdiv(B, tile_b_eff)   # ragged last block handled by Pallas

    # Truthiness gate mirrors the PyTorch module exactly:
    #   `if self.max_action and self.min_action:`
    apply_tanh = bool(max_action) and bool(min_action)
    scale = float(max_action - min_action) if apply_tanh else 0.0
    shift = float(min_action) if apply_tanh else 0.0

    kernel = functools.partial(
        _actor_kernel, state_dim=state_dim, hidden=HIDDEN, a_pad=a_pad,
        bias_col=bias_col, apply_tanh=apply_tanh, scale=scale, shift=shift)

    out_t = pl.pallas_call(
        kernel,
        out_shape=jax.ShapeDtypeStruct((a_pad, B), jnp.float32),
        grid=(n_tiles,),
        in_specs=[
            pl.BlockSpec((state_dim, tile_b_eff), lambda i: (0, i)),   # batch on lanes
            pl.BlockSpec(packed_params.shape, lambda i: (0, 0)),       # resident params
        ],
        out_specs=pl.BlockSpec((a_pad, tile_b_eff), lambda i: (0, i)),
        compiler_params=pltpu.CompilerParams(
            dimension_semantics=("parallel",),        # megacore sharding on v7x
            vmem_limit_bytes=32 * 1024 * 1024,        # double-buffered tiles stay tiny
        ),
    )(state_t, packed_params)

    if transposed_output:
        return out_t[:action_dim]                     # (action_dim, B), no extra pass
    return out_t[:action_dim].T                       # fused row-slice + transpose


def actor_reference(state, params, max_action, min_action):
    """Pure-JAX reference matching the PyTorch Actor forward."""
    w1, b1, w2, b2, w3, b3 = params
    x = jnp.maximum(state @ w1.T + b1, 0.0)
    x = jnp.maximum(x @ w2.T + b2, 0.0)
    z = x @ w3.T + b3
    if max_action and min_action:
        z = jnp.tanh(z) * (max_action - min_action) + min_action
    return z


if __name__ == "__main__":
    key = jax.random.PRNGKey(0)
    k_s, k_p = jax.random.split(key, 2)

    batch, state_dim, action_dim = 8, 24, 4
    max_action, min_action = 1.0, -1.0

    state = jax.random.normal(k_s, (batch, state_dim), jnp.float32)
    params = init_actor_params(k_p, state_dim, action_dim)
    packed = pack_actor_params(params, state_dim, action_dim)

    out = actor_forward(state, packed, action_dim, max_action, min_action)
    out = jax.block_until_ready(out)

    ref = actor_reference(state, params, max_action, min_action)
    assert out.shape == (batch, action_dim)
    assert jnp.allclose(out, ref, atol=1e-4, rtol=1e-4)

    print("KERNEL_OK")
</pallas_src>

<mosaic_0001>
module attributes {stable_mosaic.version = 11 : i64} {
  func.func @_actor_kernel(%arg0: i32, %arg1: memref<24x8xf32, #tpu.memory_space<vmem>>, %arg2: memref<40x128xf32, #tpu.memory_space<vmem>>, %arg3: memref<8x8xf32, #tpu.memory_space<vmem>>) attributes {dimension_semantics = [#tpu.dimension_semantics<parallel>], iteration_bounds = array<i64: 1>, scalar_prefetch = 0 : i64, scratch_operands = 0 : i64, tpu.core_type = #tpu.core_type<tc>, window_params = [{transform_indices = @transform_0, window_bounds = array<i64: 24, 8>}, {pipeline_mode = #tpu.pipeline_mode<synchronous>, transform_indices = @transform_1, window_bounds = array<i64: 40, 128>}, {transform_indices = @transform_2, window_bounds = array<i64: 8, 8>}]} {
    %c0 = arith.constant 0 : index
    %c0_0 = arith.constant 0 : index
    %0 = vector.load %arg1[%c0, %c0_0] : memref<24x8xf32, #tpu.memory_space<vmem>>, vector<24x8xf32>
    %c0_1 = arith.constant 0 : index
    %c0_2 = arith.constant 0 : index
    %1 = vector.load %arg2[%c0_1, %c0_2] : memref<40x128xf32, #tpu.memory_space<vmem>>, vector<16x24xf32>
    %c0_3 = arith.constant 0 : index
    %c127 = arith.constant 127 : index
    %2 = vector.load %arg2[%c0_3, %c127] : memref<40x128xf32, #tpu.memory_space<vmem>>, vector<16x1xf32>
    %c16 = arith.constant 16 : index
    %c0_4 = arith.constant 0 : index
    %3 = vector.load %arg2[%c16, %c0_4] : memref<40x128xf32, #tpu.memory_space<vmem>>, vector<16x16xf32>
    %c16_5 = arith.constant 16 : index
    %c127_6 = arith.constant 127 : index
    %4 = vector.load %arg2[%c16_5, %c127_6] : memref<40x128xf32, #tpu.memory_space<vmem>>, vector<16x1xf32>
    %c32 = arith.constant 32 : index
    %c0_7 = arith.constant 0 : index
    %5 = vector.load %arg2[%c32, %c0_7] : memref<40x128xf32, #tpu.memory_space<vmem>>, vector<8x16xf32>
    %c32_8 = arith.constant 32 : index
    %c127_9 = arith.constant 127 : index
    %6 = vector.load %arg2[%c32_8, %c127_9] : memref<40x128xf32, #tpu.memory_space<vmem>>, vector<8x1xf32>
    %cst = arith.constant dense<0.000000e+00> : vector<16x8xf32>
    %7 = tpu.matmul %1, %0, %cst {dimension_numbers = #tpu.dot_dimension_numbers<[1], [0], [0], [1], [0, 0, 1, 1], [], []>} : vector<16x24xf32>, vector<24x8xf32>, vector<16x8xf32> -> vector<16x8xf32>
    %8 = vector.broadcast %2 : vector<16x1xf32> to vector<16x8xf32>
    %9 = arith.addf %7, %8 : vector<16x8xf32>
    %cst_10 = arith.constant 0.000000e+00 : f32
    %10 = vector.broadcast %cst_10 : f32 to vector<16x8xf32>
    %11 = arith.maximumf %9, %10 : vector<16x8xf32>
    %cst_11 = arith.constant dense<0.000000e+00> : vector<16x8xf32>
    %12 = tpu.matmul %3, %11, %cst_11 {dimension_numbers = #tpu.dot_dimension_numbers<[1], [0], [0], [1], [0, 0, 1, 1], [], []>} : vector<16x16xf32>, vector<16x8xf32>, vector<16x8xf32> -> vector<16x8xf32>
    %13 = vector.broadcast %4 : vector<16x1xf32> to vector<16x8xf32>
    %14 = arith.addf %12, %13 : vector<16x8xf32>
    %cst_12 = arith.constant 0.000000e+00 : f32
    %15 = vector.broadcast %cst_12 : f32 to vector<16x8xf32>
    %16 = arith.maximumf %14, %15 : vector<16x8xf32>
    %cst_13 = arith.constant dense<0.000000e+00> : vector<8x8xf32>
    %17 = tpu.matmul %5, %16, %cst_13 {dimension_numbers = #tpu.dot_dimension_numbers<[1], [0], [0], [1], [0, 0, 1, 1], [], []>} : vector<8x16xf32>, vector<16x8xf32>, vector<8x8xf32> -> vector<8x8xf32>
    %18 = vector.broadcast %6 : vector<8x1xf32> to vector<8x8xf32>
    %19 = arith.addf %17, %18 : vector<8x8xf32>
    %20 = math.tanh %19 : vector<8x8xf32>
    %cst_14 = arith.constant 2.000000e+00 : f32
    %21 = vector.broadcast %cst_14 : f32 to vector<8x8xf32>
    %22 = arith.mulf %20, %21 : vector<8x8xf32>
    %cst_15 = arith.constant -1.000000e+00 : f32
    %23 = vector.broadcast %cst_15 : f32 to vector<8x8xf32>
    %24 = arith.addf %22, %23 : vector<8x8xf32>
    %c0_16 = arith.constant 0 : index
    %c0_17 = arith.constant 0 : index
    %25 = vector.load %arg3[%c0_16, %c0_17] : memref<8x8xf32, #tpu.memory_space<vmem>>, vector<8x8xf32>
    tpu.vector_store %arg3[%c0_16, %c0_17], %24 {strides = array<i32>} : memref<8x8xf32, #tpu.memory_space<vmem>>, vector<8x8xf32>,
    return
  }
  func.func @transform_0(%arg0: i32) -> (i32, i32) {
    %c0_i32 = arith.constant 0 : i32
    %c0_i32_0 = arith.constant 0 : i32
    return %c0_i32, %arg0 : i32, i32
  }
  func.func @transform_1(%arg0: i32) -> (i32, i32) {
    %c0_i32 = arith.constant 0 : i32
    %c0_i32_0 = arith.constant 0 : i32
    %c0_i32_1 = arith.constant 0 : i32
    return %c0_i32, %c0_i32_0 : i32, i32
  }
  func.func @transform_2(%arg0: i32) -> (i32, i32) {
    %c0_i32 = arith.constant 0 : i32
    %c0_i32_0 = arith.constant 0 : i32
    return %c0_i32, %arg0 : i32, i32
  }
}

</mosaic_0001>

<llo_original>
// kernel: tpu_custom_call.1
$region0: #{tpu_custom_call.1}
  #allocation0 [shape = 'u32[]', space=smem, size = 0x4, offset = 0x4, fixed_abs, tag = 'smem constant byte address 0x4 - core index']
  #allocation1 [shape = 'u32[72,128]{1,0:T(1,128)}', space=vmem, size = 0x9000, scoped, tag = 'internal scratch']
  %s0 = inlined_call_operand.vmem [shape: f32[24,8], index: 0, kind: input, shape index: {}]
  %s1 = inlined_call_operand.hbm [shape: f32[40,128], index: 1, kind: input, shape index: {}]
  %s2 = inlined_call_operand.hbm [shape: f32[8,8], index: 2, kind: output, shape index: {}]
  %s3 = sld [smem:[#allocation0]]
  $region22: #{tpu_custom_call.1} parent=0
    _
  %s5 = ssub.s32 1, %s3
  %s6 = scalar_select 0, %s5, %s3
  $region1: #{tpu_custom_call.1} parent=0
    #allocation2 [shape = 'u8[20480]{0}', space=vmem, size = 0x5000, scoped, tag = 'input window, operand 1, single buffered']
    #allocation3 [shape = 's32[1]{0}', space=sflag, size = 0x4, scoped, tag = 'scoped memory for tpu_custom_call.1']
    #allocation4 [shape = 's32[1]{0}', space=sflag, size = 0x4, scoped, tag = 'scoped memory for tpu_custom_call.1']
    #allocation5 [shape = 'u8[4096]{0}', space=vmem, size = 0x1000, scoped, tag = 'output window, operand 0, single buffered']
    %7 = vsyncpa [#allocation3], 0
    %8 = vsyncpa [#allocation4], 0
    // Predicated region
    $region2: #{tpu_custom_call.1} parent=1 // pred_check
      _
    $region3: #{tpu_custom_call.1} parent=1 // pred_check_branch
      %10 = sbr.rel (0) target = $region5
    $region4: #{tpu_custom_call.1} parent=1 // pred_region
      _
    $region5: #{tpu_custom_call.1} parent=1 // pred_fallthru
      _
    // Predicated region
    $region6: #{tpu_custom_call.1} parent=1 // pred_check
      _
    $region7: #{tpu_custom_call.1} parent=1 // pred_check_branch
      %12 = sbr.rel (0) target = $region9
    $region8: #{tpu_custom_call.1} parent=1 // pred_region
      %14 = vsyncadd [#allocation3], 0
      %s15 = sshll.u32 %s1, 4
      %s16 = int_to_ptr.hbm [resolvable:$true] %s15
      %s17 = sshll.u32 [#allocation2], 4
      %s18 = int_to_ptr.vmem [resolvable:$true] %s17
      %23 = dma.hbm_to_vmem [thread:$0]  %s16, 640, %s18, [#allocation3], 128, 128, 8
    $region9: #{tpu_custom_call.1} parent=1 // pred_fallthru
      _
    // Predicated region
    $region10: #{tpu_custom_call.1} parent=1 // pred_check
      _
    $region11: #{tpu_custom_call.1} parent=1 // pred_check_branch
      %25 = sbr.rel (0) target = $region13
    $region12: #{tpu_custom_call.1} parent=1 // pred_region
      %27 = dma.done [#allocation3], 640
    $region13: #{tpu_custom_call.1} parent=1 // pred_fallthru
      _
    %v28 = vld [vmem:[%s0] sm:$0xff]
    %v29 = vld [vmem:[%s0 + $0x8] sm:$0xff]
    %v30 = vld [vmem:[%s0 + $0x10] sm:$0xff]
    %v31 = vld [vmem:[#allocation2] sm:$0xff]
    %v32 = vld [vmem:[#allocation2 + $0x8] sm:$0xff]
    %v33 = vld [vmem:[#allocation2 + $0x10] sm:$0xff]
    %v34 = vld [vmem:[#allocation2 + $0x18] sm:$0xff]
    %v35 = vld [vmem:[#allocation2 + $0x20] sm:$0xff]
    %37 = vset.pattern.permute.xlu0 127
    %38 = vperm.xlu0 %37, %v31
    %v39 = vpop.permute.xlu0 %38
    %42 = vset.pattern.permute.xlu0 127
    %43 = vperm.xlu0 %42, %v32
    %v44 = vpop.permute.xlu0 %43
    %vm46 = vcmask 195584
    %v47 = vsel %vm46, %v31, 0
    %v49 = vsel %vm46, %v32, 0
    %51 = vmatpush.msra.mxu0 0.0
    %52 = vmatpush.msra.mxu0 0.0
    %53 = vmatpush.msra.mxu0 0.0
    %54 = vmatpush.msra.mxu0 0.0
    %55 = vmatpush.msra.mxu0 0.0
    %56 = vmatpush.msra.mxu0 0.0
    %57 = vmatpush.msra.mxu0 0.0
    %58 = vmatpush.msra.mxu0 0.0
    %59 = vmatpush.msra.mxu0 0.0
    %60 = vmatpush.msra.mxu0 0.0
    %61 = vmatpush.msra.mxu0 0.0
    %62 = vmatpush.msra.mxu0 0.0
    %63 = vmatpush.msra.mxu0 0.0
    %64 = vmatpush.msra.mxu0 %v30
    %65 = vmatpush.msra.mxu0 %v29
    %66 = vmatpush.msra.mxu0 %v28
    %67 = vmatmul.f32.gmra.mxu0 %v47
    %v68 = vpop.f32.mrf.mxu0
    %v69 = vadd.f32 %v39, %v68
    %70 = vmatmul.f32.gmra.mxu0 %v49
    %v71 = vpop.f32.mrf.mxu0
    %v72 = vadd.f32 %v44, %v71
    %73 = vdwg.mxu0
    %v74 = vmax.f32 %v69, 0.0
    %v75 = vmax.f32 %v72, 0.0
    %77 = vset.pattern.permute.xlu0 127
    %78 = vperm.xlu0 %77, %v33
    %v79 = vpop.permute.xlu0 %78
    %82 = vset.pattern.permute.xlu0 127
    %83 = vperm.xlu0 %82, %v34
    %v84 = vpop.permute.xlu0 %83
    %vm86 = vcmask 130048
    %v87 = vsel %vm86, %v33, 0
    %v89 = vsel %vm86, %v34, 0
    %91 = vmatpush.msra.mxu0 0.0
    %92 = vmatpush.msra.mxu0 0.0
    %93 = vmatpush.msra.mxu0 0.0
    %94 = vmatpush.msra.mxu0 0.0
    %95 = vmatpush.msra.mxu0 0.0
    %96 = vmatpush.msra.mxu0 0.0
    %97 = vmatpush.msra.mxu0 0.0
    %98 = vmatpush.msra.mxu0 0.0
    %99 = vmatpush.msra.mxu0 0.0
    %100 = vmatpush.msra.mxu0 0.0
    %101 = vmatpush.msra.mxu0 0.0
    %102 = vmatpush.msra.mxu0 0.0
    %103 = vmatpush.msra.mxu0 0.0
    %104 = vmatpush.msra.mxu0 0.0
    %105 = vmatpush.msra.mxu0 %v75
    %106 = vmatpush.msra.mxu0 %v74
    %107 = vmatmul.f32.gmra.mxu0 %v87
    %v108 = vpop.f32.mrf.mxu0
    %v109 = vadd.f32 %v79, %v108
    %110 = vmatmul.f32.gmra.mxu0 %v89
    %v111 = vpop.f32.mrf.mxu0
    %v112 = vadd.f32 %v84, %v111
    %113 = vdwg.mxu0
    %v114 = vmax.f32 %v109, 0.0
    %v115 = vmax.f32 %v112, 0.0
    %117 = vset.pattern.permute.xlu0 127
    %118 = vperm.xlu0 %117, %v35
    %v119 = vpop.permute.xlu0 %118
    %v121 = vsel %vm86, %v35, 0
    %123 = vmatpush.msra.mxu0 0.0
    %124 = vmatpush.msra.mxu0 0.0
    %125 = vmatpush.msra.mxu0 0.0
    %126 = vmatpush.msra.mxu0 0.0
    %127 = vmatpush.msra.mxu0 0.0
    %128 = vmatpush.msra.mxu0 0.0
    %129 = vmatpush.msra.mxu0 0.0
    %130 = vmatpush.msra.mxu0 0.0
    %131 = vmatpush.msra.mxu0 0.0
    %132 = vmatpush.msra.mxu0 0.0
    %133 = vmatpush.msra.mxu0 0.0
    %134 = vmatpush.msra.mxu0 0.0
    %135 = vmatpush.msra.mxu0 0.0
    %136 = vmatpush.msra.mxu0 0.0
    %137 = vmatpush.msra.mxu0 %v115
    %138 = vmatpush.msra.mxu0 %v114
    %139 = vmatmul.f32.gmra.mxu0 %v121
    %v140 = vpop.f32.mrf.mxu0
    %v141 = vadd.f32 %v119, %v140
    %142 = vdwg.mxu0
    %v143 = vtanh.pop %v141
    %v144 = vmul.f32 %v143, 2.0
    %v145 = vadd.f32 %v144, -1.0
    %vm146 = vcmask 64512
    %147 = vst.msk [vmem:[#allocation5] sm:$0xff] %vm146, %v145
    // Predicated region
    $region14: #{tpu_custom_call.1} parent=1 // pred_check
      _
    $region15: #{tpu_custom_call.1} parent=1 // pred_check_branch
      %149 = sbr.rel (0) target = $region17
    $region16: #{tpu_custom_call.1} parent=1 // pred_region
      %151 = vsyncadd [#allocation4], 0
      %s153 = sshll.u32 [#allocation5], 4
      %s154 = int_to_ptr.vmem [resolvable:$true] %s153
      %s155 = sshll.u32 %s2, 4
      %s156 = int_to_ptr.hbm [resolvable:$true] %s155
      %158 = dma.vmem_to_hbm [thread:$0]  %s154, 128, %s156, [#allocation4]
    $region17: #{tpu_custom_call.1} parent=1 // pred_fallthru
      _
    // Predicated region
    $region18: #{tpu_custom_call.1} parent=1 // pred_check
      _
    $region19: #{tpu_custom_call.1} parent=1 // pred_check_branch
      %160 = sbr.rel (0) target = $region21
    $region20: #{tpu_custom_call.1} parent=1 // pred_region
      %162 = dma.done [#allocation4], 128
    $region21: #{tpu_custom_call.1} parent=1 // pred_fallthru
      _
    %163 = vsyncpa [#allocation3], 1
    %164 = vsyncpa [#allocation4], 1

</llo_original>
